<compile_context>
chip_gen: v7x
topology: tpu7x:2x2x1
jax: 0.10.0
libtpu: 0.0.40
codegen_flags: <defaults>
</compile_context>

<pallas_src>
import functools

import jax
import jax.numpy as jnp
from jax.experimental import pallas as pl
from jax.experimental.pallas import tpu as pltpu

BN_EPS = 1e-5
LANE = 128


def _round_up(n, m=LANE):
    return ((n + m - 1) // m) * m


def _bn_train(x, gamma, beta):
    """BatchNorm1d, training mode, biased batch stats.

    Single-pass formulation: mean and E[x^2] are two *independent* sublane
    reductions; var = E[x^2] - mean^2 (clamped at 0 against cancellation).
    gamma is folded into the rsqrt scale so the apply step is scale + shift."""
    mean = jnp.mean(x, axis=0, keepdims=True)
    msq = jnp.mean(x * x, axis=0, keepdims=True)
    var = jnp.maximum(msq - mean * mean, 0.0)
    scale = gamma * jax.lax.rsqrt(var + BN_EPS)
    return x * scale + (beta - mean * scale)


def value_kernel(s_ref, a_ref, w1_ref, wa_ref, w2_ref, vec_ref, out_ref):
    # s_ref   : (B, input_dims)     f32   state (unpadded)
    # a_ref   : (B, n_actions)      f32   action (unpadded)
    # w1_ref  : (input_dims, P)     bf16  fc1 weight, zero-padded to P lanes
    # wa_ref  : (n_actions, P)      bf16  action_value weight, zero-padded
    # w2_ref  : (P, P)              bf16  fc2 weight, zero-padded
    # vec_ref : (8, P)              f32   rows: g1, bt1, g2, bt2, ba, wq, bq
    # out_ref : (B, 1)              f32   q-values
    vec = vec_ref[...]
    g1, bt1 = vec[0:1, :], vec[1:2, :]
    g2, bt2 = vec[2:3, :], vec[3:4, :]
    ba, wq_row = vec[4:5, :], vec[5:6, :]
    bq = vec[6:7, 0:1]                                   # (1, 1)

    # fc1(state): bias cancels exactly under training-mode BN.
    h1_pre = jnp.dot(
        s_ref[...].astype(jnp.bfloat16), w1_ref[...],
        preferred_element_type=jnp.float32,
    )                                                    # (B, P)
    h1 = jnp.maximum(_bn_train(h1_pre, g1, bt1), 0.0)

    # action_value(action) + bias (independent of the fc path; MXU push is
    # issued early so it overlaps the BN chain).
    av = jnp.dot(
        a_ref[...].astype(jnp.bfloat16), wa_ref[...],
        preferred_element_type=jnp.float32,
    ) + ba                                               # (B, P)

    # fc2: bias cancels under BN.
    h2_pre = jnp.dot(
        h1.astype(jnp.bfloat16), w2_ref[...],
        preferred_element_type=jnp.float32,
    )                                                    # (B, P)
    h2 = jnp.maximum(_bn_train(h2_pre, g2, bt2), 0.0)

    sa = jnp.maximum(h2 + av, 0.0)

    # q head: N=1 matmul replaced by VPU multiply + lane reduction.
    q = jnp.sum(sa * wq_row, axis=-1, keepdims=True)     # (B, 1)
    out_ref[...] = q + bq


def value_forward(state, action, packed):
    """Runs the fused critic forward; returns (B, 1) q-values."""
    B = state.shape[0]
    return pl.pallas_call(
        value_kernel,
        out_shape=jax.ShapeDtypeStruct((B, 1), jnp.float32),
        in_specs=[pl.BlockSpec(memory_space=pltpu.MemorySpace.VMEM)] * 6,
        out_specs=pl.BlockSpec(memory_space=pltpu.MemorySpace.VMEM),
    )(
        state.astype(jnp.float32),
        action.astype(jnp.float32),
        packed["w1"],
        packed["wa"],
        packed["w2"],
        packed["vec"],
    )


def init_params(key, input_dims, fc1_dims, fc2_dims, n_actions):
    """Deterministic init matching the shapes/ranges in Value.__init__.
    Linear weights are stored transposed vs PyTorch: (in_features, out_features)."""
    ks = jax.random.split(key, 8)
    f1 = 1.0 / jnp.sqrt(jnp.float32(fc1_dims))   # reference: 1/sqrt(weight.size()[0])
    f2 = 1.0 / jnp.sqrt(jnp.float32(fc2_dims))
    f3 = 0.0003
    fa = 1.0 / jnp.sqrt(jnp.float32(n_actions))  # PyTorch default Linear bound

    u = lambda k, shape, b: jax.random.uniform(k, shape, jnp.float32, -b, b)

    return {
        "w1": u(ks[0], (input_dims, fc1_dims), f1),
        "b1": u(ks[1], (1, fc1_dims), f1),        # dead under training-mode BN
        "g1": jnp.ones((1, fc1_dims), jnp.float32),
        "bt1": jnp.zeros((1, fc1_dims), jnp.float32),
        "w2": u(ks[2], (fc1_dims, fc2_dims), f2),
        "b2": u(ks[3], (1, fc2_dims), f2),        # dead under training-mode BN
        "g2": jnp.ones((1, fc2_dims), jnp.float32),
        "bt2": jnp.zeros((1, fc2_dims), jnp.float32),
        "wa": u(ks[4], (n_actions, fc2_dims), fa),
        "ba": u(ks[5], (1, fc2_dims), fa),
        "wq": u(ks[6], (fc2_dims, 1), f3),
        "bq": u(ks[7], (1, 1), f3),
    }


def pack_params(params, input_dims, fc1_dims, fc2_dims, n_actions):
    """One-time packing: zero-pad feature dims to 128 lanes, pre-cast the MXU
    weights to bf16 (halves per-call weight DMA, no in-kernel weight casts),
    and pack all small per-feature vectors into a single (8, P) f32 array.
    b1/b2 are dropped: they cancel exactly under training-mode BatchNorm."""
    p = _round_up(max(fc1_dims, fc2_dims))

    w1 = jnp.zeros((input_dims, p), jnp.float32)
    w1 = w1.at[:, :fc1_dims].set(params["w1"]).astype(jnp.bfloat16)

    wa = jnp.zeros((n_actions, p), jnp.float32)
    wa = wa.at[:, :fc2_dims].set(params["wa"]).astype(jnp.bfloat16)

    w2 = jnp.zeros((p, p), jnp.float32)
    w2 = w2.at[:fc1_dims, :fc2_dims].set(params["w2"]).astype(jnp.bfloat16)

    vec = jnp.zeros((8, p), jnp.float32)
    vec = vec.at[0, :fc1_dims].set(params["g1"][0])     # padded gamma = 0 keeps
    vec = vec.at[1, :fc1_dims].set(params["bt1"][0])    # dead lanes at exactly 0
    vec = vec.at[2, :fc2_dims].set(params["g2"][0])
    vec = vec.at[3, :fc2_dims].set(params["bt2"][0])
    vec = vec.at[4, :fc2_dims].set(params["ba"][0])
    vec = vec.at[5, :fc2_dims].set(params["wq"][:, 0])
    vec = vec.at[6, 0].set(params["bq"][0, 0])

    return {"w1": w1, "wa": wa, "w2": w2, "vec": vec}


if __name__ == "__main__":
    batch = 8
    input_dims = 32
    fc1_dims = 64
    fc2_dims = 64
    n_actions = 8

    key = jax.random.PRNGKey(0)
    kp, ks, ka = jax.random.split(key, 3)

    params = init_params(kp, input_dims, fc1_dims, fc2_dims, n_actions)
    packed = pack_params(params, input_dims, fc1_dims, fc2_dims, n_actions)

    state = jax.random.normal(ks, (batch, input_dims), jnp.float32)
    action = jax.random.normal(ka, (batch, n_actions), jnp.float32)

    forward = jax.jit(functools.partial(value_forward, packed=packed))
    q = forward(state, action)
    jax.block_until_ready(q)
    assert q.shape == (batch, 1), q.shape
    assert bool(jnp.all(jnp.isfinite(q)))
    print("KERNEL_OK")
</pallas_src>

<mosaic_0001>
module attributes {stable_mosaic.version = 11 : i64} {
  func.func @value_kernel(%arg0: memref<8x32xf32, #tpu.memory_space<vmem>>, %arg1: memref<8x8xf32, #tpu.memory_space<vmem>>, %arg2: memref<32x128xbf16, #tpu.memory_space<vmem>>, %arg3: memref<8x128xbf16, #tpu.memory_space<vmem>>, %arg4: memref<128x128xbf16, #tpu.memory_space<vmem>>, %arg5: memref<8x128xf32, #tpu.memory_space<vmem>>, %arg6: memref<8x1xf32, #tpu.memory_space<vmem>>) attributes {dimension_semantics = [], scalar_prefetch = 0 : i64, scratch_operands = 0 : i64, tpu.core_type = #tpu.core_type<tc>} {
    %c0 = arith.constant 0 : index
    %c0_0 = arith.constant 0 : index
    %0 = vector.load %arg5[%c0, %c0_0] : memref<8x128xf32, #tpu.memory_space<vmem>>, vector<8x128xf32>
    %1 = vector.extract_strided_slice %0 {offsets = [0, 0], sizes = [1, 128], strides = [1, 1]} : vector<8x128xf32> to vector<1x128xf32>
    %2 = vector.extract_strided_slice %0 {offsets = [1, 0], sizes = [1, 128], strides = [1, 1]} : vector<8x128xf32> to vector<1x128xf32>
    %3 = vector.extract_strided_slice %0 {offsets = [2, 0], sizes = [1, 128], strides = [1, 1]} : vector<8x128xf32> to vector<1x128xf32>
    %4 = vector.extract_strided_slice %0 {offsets = [3, 0], sizes = [1, 128], strides = [1, 1]} : vector<8x128xf32> to vector<1x128xf32>
    %5 = vector.extract_strided_slice %0 {offsets = [4, 0], sizes = [1, 128], strides = [1, 1]} : vector<8x128xf32> to vector<1x128xf32>
    %6 = vector.extract_strided_slice %0 {offsets = [5, 0], sizes = [1, 128], strides = [1, 1]} : vector<8x128xf32> to vector<1x128xf32>
    %7 = vector.extract_strided_slice %0 {offsets = [6, 0], sizes = [1, 1], strides = [1, 1]} : vector<8x128xf32> to vector<1x1xf32>
    %c0_1 = arith.constant 0 : index
    %c0_2 = arith.constant 0 : index
    %8 = vector.load %arg0[%c0_1, %c0_2] : memref<8x32xf32, #tpu.memory_space<vmem>>, vector<8x32xf32>
    %9 = arith.truncf %8 : vector<8x32xf32> to vector<8x32xbf16>
    %c0_3 = arith.constant 0 : index
    %c0_4 = arith.constant 0 : index
    %10 = vector.load %arg2[%c0_3, %c0_4] : memref<32x128xbf16, #tpu.memory_space<vmem>>, vector<32x128xbf16>
    %cst = arith.constant dense<0.000000e+00> : vector<8x128xf32>
    %11 = tpu.matmul %9, %10, %cst {dimension_numbers = #tpu.dot_dimension_numbers<[1], [0], [0], [1], [0, 0, 1, 1], [], []>} : vector<8x32xbf16>, vector<32x128xbf16>, vector<8x128xf32> -> vector<8x128xf32>
    %cst_5 = arith.constant dense<0.000000e+00> : vector<128xf32>
    %12 = vector.multi_reduction <add>, %11, %cst_5 [0] : vector<8x128xf32> to vector<128xf32>
    %13 = vector.shape_cast %12 : vector<128xf32> to vector<1x128xf32>
    %cst_6 = arith.constant 8.000000e+00 : f32
    %14 = vector.broadcast %cst_6 : f32 to vector<1x128xf32>
    %15 = arith.divf %13, %14 : vector<1x128xf32>
    %16 = arith.mulf %11, %11 : vector<8x128xf32>
    %cst_7 = arith.constant dense<0.000000e+00> : vector<128xf32>
    %17 = vector.multi_reduction <add>, %16, %cst_7 [0] : vector<8x128xf32> to vector<128xf32>
    %18 = vector.shape_cast %17 : vector<128xf32> to vector<1x128xf32>
    %cst_8 = arith.constant 8.000000e+00 : f32
    %19 = vector.broadcast %cst_8 : f32 to vector<1x128xf32>
    %20 = arith.divf %18, %19 : vector<1x128xf32>
    %21 = arith.mulf %15, %15 : vector<1x128xf32>
    %22 = arith.subf %20, %21 : vector<1x128xf32>
    %cst_9 = arith.constant 0.000000e+00 : f32
    %23 = vector.broadcast %cst_9 : f32 to vector<1x128xf32>
    %24 = arith.maximumf %22, %23 : vector<1x128xf32>
    %cst_10 = arith.constant 9.99999974E-6 : f32
    %25 = vector.broadcast %cst_10 : f32 to vector<1x128xf32>
    %26 = arith.addf %24, %25 : vector<1x128xf32>
    %27 = math.rsqrt %26 : vector<1x128xf32>
    %28 = arith.mulf %1, %27 : vector<1x128xf32>
    %29 = vector.broadcast %28 : vector<1x128xf32> to vector<8x128xf32>
    %30 = arith.mulf %11, %29 : vector<8x128xf32>
    %31 = arith.mulf %15, %28 : vector<1x128xf32>
    %32 = arith.subf %2, %31 : vector<1x128xf32>
    %33 = vector.broadcast %32 : vector<1x128xf32> to vector<8x128xf32>
    %34 = arith.addf %30, %33 : vector<8x128xf32>
    %cst_11 = arith.constant 0.000000e+00 : f32
    %35 = vector.broadcast %cst_11 : f32 to vector<8x128xf32>
    %36 = arith.maximumf %34, %35 : vector<8x128xf32>
    %c0_12 = arith.constant 0 : index
    %c0_13 = arith.constant 0 : index
    %37 = vector.load %arg1[%c0_12, %c0_13] : memref<8x8xf32, #tpu.memory_space<vmem>>, vector<8x8xf32>
    %38 = arith.truncf %37 : vector<8x8xf32> to vector<8x8xbf16>
    %c0_14 = arith.constant 0 : index
    %c0_15 = arith.constant 0 : index
    %39 = vector.load %arg3[%c0_14, %c0_15] : memref<8x128xbf16, #tpu.memory_space<vmem>>, vector<8x128xbf16>
    %cst_16 = arith.constant dense<0.000000e+00> : vector<8x128xf32>
    %40 = tpu.matmul %38, %39, %cst_16 {dimension_numbers = #tpu.dot_dimension_numbers<[1], [0], [0], [1], [0, 0, 1, 1], [], []>} : vector<8x8xbf16>, vector<8x128xbf16>, vector<8x128xf32> -> vector<8x128xf32>
    %41 = vector.broadcast %5 : vector<1x128xf32> to vector<8x128xf32>
    %42 = arith.addf %40, %41 : vector<8x128xf32>
    %43 = arith.truncf %36 : vector<8x128xf32> to vector<8x128xbf16>
    %c0_17 = arith.constant 0 : index
    %c0_18 = arith.constant 0 : index
    %44 = vector.load %arg4[%c0_17, %c0_18] : memref<128x128xbf16, #tpu.memory_space<vmem>>, vector<128x128xbf16>
    %cst_19 = arith.constant dense<0.000000e+00> : vector<8x128xf32>
    %45 = tpu.matmul %43, %44, %cst_19 {dimension_numbers = #tpu.dot_dimension_numbers<[1], [0], [0], [1], [0, 0, 1, 1], [], []>} : vector<8x128xbf16>, vector<128x128xbf16>, vector<8x128xf32> -> vector<8x128xf32>
    %cst_20 = arith.constant dense<0.000000e+00> : vector<128xf32>
    %46 = vector.multi_reduction <add>, %45, %cst_20 [0] : vector<8x128xf32> to vector<128xf32>
    %47 = vector.shape_cast %46 : vector<128xf32> to vector<1x128xf32>
    %cst_21 = arith.constant 8.000000e+00 : f32
    %48 = vector.broadcast %cst_21 : f32 to vector<1x128xf32>
    %49 = arith.divf %47, %48 : vector<1x128xf32>
    %50 = arith.mulf %45, %45 : vector<8x128xf32>
    %cst_22 = arith.constant dense<0.000000e+00> : vector<128xf32>
    %51 = vector.multi_reduction <add>, %50, %cst_22 [0] : vector<8x128xf32> to vector<128xf32>
    %52 = vector.shape_cast %51 : vector<128xf32> to vector<1x128xf32>
    %cst_23 = arith.constant 8.000000e+00 : f32
    %53 = vector.broadcast %cst_23 : f32 to vector<1x128xf32>
    %54 = arith.divf %52, %53 : vector<1x128xf32>
    %55 = arith.mulf %49, %49 : vector<1x128xf32>
    %56 = arith.subf %54, %55 : vector<1x128xf32>
    %cst_24 = arith.constant 0.000000e+00 : f32
    %57 = vector.broadcast %cst_24 : f32 to vector<1x128xf32>
    %58 = arith.maximumf %56, %57 : vector<1x128xf32>
    %cst_25 = arith.constant 9.99999974E-6 : f32
    %59 = vector.broadcast %cst_25 : f32 to vector<1x128xf32>
    %60 = arith.addf %58, %59 : vector<1x128xf32>
    %61 = math.rsqrt %60 : vector<1x128xf32>
    %62 = arith.mulf %3, %61 : vector<1x128xf32>
    %63 = vector.broadcast %62 : vector<1x128xf32> to vector<8x128xf32>
    %64 = arith.mulf %45, %63 : vector<8x128xf32>
    %65 = arith.mulf %49, %62 : vector<1x128xf32>
    %66 = arith.subf %4, %65 : vector<1x128xf32>
    %67 = vector.broadcast %66 : vector<1x128xf32> to vector<8x128xf32>
    %68 = arith.addf %64, %67 : vector<8x128xf32>
    %cst_26 = arith.constant 0.000000e+00 : f32
    %69 = vector.broadcast %cst_26 : f32 to vector<8x128xf32>
    %70 = arith.maximumf %68, %69 : vector<8x128xf32>
    %71 = arith.addf %70, %42 : vector<8x128xf32>
    %cst_27 = arith.constant 0.000000e+00 : f32
    %72 = vector.broadcast %cst_27 : f32 to vector<8x128xf32>
    %73 = arith.maximumf %71, %72 : vector<8x128xf32>
    %74 = vector.broadcast %6 : vector<1x128xf32> to vector<8x128xf32>
    %75 = arith.mulf %73, %74 : vector<8x128xf32>
    %cst_28 = arith.constant dense<0.000000e+00> : vector<8xf32>
    %76 = vector.multi_reduction <add>, %75, %cst_28 [1] : vector<8x128xf32> to vector<8xf32>
    %77 = vector.shape_cast %76 : vector<8xf32> to vector<8x1xf32>
    %78 = vector.broadcast %7 : vector<1x1xf32> to vector<8x1xf32>
    %79 = arith.addf %77, %78 : vector<8x1xf32>
    %c0_29 = arith.constant 0 : index
    %c0_30 = arith.constant 0 : index
    %80 = vector.load %arg6[%c0_29, %c0_30] : memref<8x1xf32, #tpu.memory_space<vmem>>, vector<8x1xf32>
    tpu.vector_store %arg6[%c0_29, %c0_30], %79 {strides = array<i32>} : memref<8x1xf32, #tpu.memory_space<vmem>>, vector<8x1xf32>,
    return
  }
}

</mosaic_0001>

<llo_original>
// kernel: value_forward.1
$region0: #{value_forward.1}
  #allocation0 [shape = 'u32[]', space=smem, size = 0x4, offset = 0x4, fixed_abs, tag = 'smem constant byte address 0x4 - core index']
  #allocation1 [shape = 'u32[144,128]{1,0:T(1,128)}', space=vmem, size = 0x12000, scoped, tag = 'internal scratch']
  %s0 = inlined_call_operand.hbm [shape: f32[8,32], index: 0, kind: input, shape index: {}]
  %s1 = inlined_call_operand.hbm [shape: f32[8,8], index: 1, kind: input, shape index: {}]
  %s2 = inlined_call_operand.vmem [shape: bf16[32,128], index: 2, kind: input, shape index: {}]
  %s3 = inlined_call_operand.vmem [shape: bf16[8,128], index: 3, kind: input, shape index: {}]
  %s4 = inlined_call_operand.hbm [shape: bf16[128,128], index: 4, kind: input, shape index: {}]
  %s5 = inlined_call_operand.hbm [shape: f32[8,128], index: 5, kind: input, shape index: {}]
  %s6 = inlined_call_operand.vmem [shape: f32[8,1], index: 6, kind: output, shape index: {}]
  %s7 = sld [smem:[#allocation0]]
  $region50: #{value_forward.1} parent=0
    _
  %s9 = ssub.s32 1, %s7
  %s10 = scalar_select 0, %s9, %s7
  $region1: #{value_forward.1} parent=0
    #allocation2 [shape = 'u8[4096]{0}', space=vmem, size = 0x1000, scoped, tag = 'input window, operand 0, single buffered']
    #allocation3 [shape = 's32[1]{0}', space=sflag, size = 0x4, scoped, tag = 'scoped memory for value_forward.1']
    #allocation4 [shape = 'u8[4096]{0}', space=vmem, size = 0x1000, scoped, tag = 'input window, operand 1, single buffered']
    #allocation5 [shape = 's32[1]{0}', space=sflag, size = 0x4, scoped, tag = 'scoped memory for value_forward.1']
    #allocation6 [shape = 'u8[32768]{0}', space=vmem, size = 0x8000, scoped, tag = 'input window, operand 4, single buffered']
    #allocation7 [shape = 'u8[4096]{0}', space=vmem, size = 0x1000, scoped, tag = 'input window, operand 5, single buffered']
    #allocation8 [shape = 's32[1]{0}', space=sflag, size = 0x4, scoped, tag = 'scoped memory for value_forward.1']
    %11 = vsyncpa [#allocation3], 0
    %12 = vsyncpa [#allocation5], 0
    %13 = vsyncpa [#allocation8], 0
    // Predicated region
    $region2: #{value_forward.1} parent=1 // pred_check
      _
    $region3: #{value_forward.1} parent=1 // pred_check_branch
      %15 = sbr.rel (0) target = $region5
    $region4: #{value_forward.1} parent=1 // pred_region
      %s17 = ssub.s32 128, 128
      %18 = vsyncadd [#allocation3], %s17
      %s20 = sshll.u32 [#allocation2], 4
      %s21 = int_to_ptr.vmem [resolvable:$true] %s20
      %23 = dma.hbm_to_vmem [thread:$0]  %s0, 128, %s21, [#allocation3]
    $region5: #{value_forward.1} parent=1 // pred_fallthru
      _
    // Predicated region
    $region6: #{value_forward.1} parent=1 // pred_check
      _
    $region7: #{value_forward.1} parent=1 // pred_check_branch
      %25 = sbr.rel (0) target = $region9
    $region8: #{value_forward.1} parent=1 // pred_region
      %s27 = ssub.s32 128, 128
      %28 = vsyncadd [#allocation5], %s27
      %s30 = sshll.u32 [#allocation4], 4
      %s31 = int_to_ptr.vmem [resolvable:$true] %s30
      %33 = dma.hbm_to_vmem [thread:$0]  %s1, 128, %s31, [#allocation5]
    $region9: #{value_forward.1} parent=1 // pred_fallthru
      _
    // Predicated region
    $region10: #{value_forward.1} parent=1 // pred_check
      _
    $region11: #{value_forward.1} parent=1 // pred_check_branch
      %35 = sbr.rel (0) target = $region13
    $region12: #{value_forward.1} parent=1 // pred_region
      _
    $region13: #{value_forward.1} parent=1 // pred_fallthru
      _
    // Predicated region
    $region14: #{value_forward.1} parent=1 // pred_check
      _
    $region15: #{value_forward.1} parent=1 // pred_check_branch
      %37 = sbr.rel (0) target = $region17
    $region16: #{value_forward.1} parent=1 // pred_region
      _
    $region17: #{value_forward.1} parent=1 // pred_fallthru
      _
    // Predicated region
    $region18: #{value_forward.1} parent=1 // pred_check
      _
    $region19: #{value_forward.1} parent=1 // pred_check_branch
      %39 = sbr.rel (0) target = $region21
    $region20: #{value_forward.1} parent=1 // pred_region
      %s41 = ssub.s32 1024, 1024
      %42 = vsyncadd [#allocation5], %s41
      %s43 = sshll.u32 [#allocation6], 4
      %s44 = int_to_ptr.vmem [resolvable:$true] %s43
      %49 = dma.hbm_to_vmem [thread:$0]  %s4, 1024, %s44, [#allocation5], 64, 64, 4
    $region21: #{value_forward.1} parent=1 // pred_fallthru
      _
    // Predicated region
    $region22: #{value_forward.1} parent=1 // pred_check
      _
    $region23: #{value_forward.1} parent=1 // pred_check_branch
      %51 = sbr.rel (0) target = $region25
    $region24: #{value_forward.1} parent=1 // pred_region
      %s53 = ssub.s32 128, 128
      %54 = vsyncadd [#allocation8], %s53
      %s56 = sshll.u32 [#allocation7], 4
      %s57 = int_to_ptr.vmem [resolvable:$true] %s56
      %59 = dma.hbm_to_vmem [thread:$0]  %s5, 128, %s57, [#allocation8]
    $region25: #{value_forward.1} parent=1 // pred_fallthru
      _
    // Predicated region
    $region26: #{value_forward.1} parent=1 // pred_check
      _
    $region27: #{value_forward.1} parent=1 // pred_check_branch
      %61 = sbr.rel (0) target = $region29
    $region28: #{value_forward.1} parent=1 // pred_region
      %62 = dma.done [#allocation3], 128
    $region29: #{value_forward.1} parent=1 // pred_fallthru
      _
    // Predicated region
    $region30: #{value_forward.1} parent=1 // pred_check
      _
    $region31: #{value_forward.1} parent=1 // pred_check_branch
      %64 = sbr.rel (0) target = $region33
    $region32: #{value_forward.1} parent=1 // pred_region
      %65 = dma.done [#allocation5], 128
    $region33: #{value_forward.1} parent=1 // pred_fallthru
      _
    // Predicated region
    $region34: #{value_forward.1} parent=1 // pred_check
      _
    $region35: #{value_forward.1} parent=1 // pred_check_branch
      %67 = sbr.rel (0) target = $region37
    $region36: #{value_forward.1} parent=1 // pred_region
      %68 = dma.done [#allocation5], 1024
    $region37: #{value_forward.1} parent=1 // pred_fallthru
      _
    // Predicated region
    $region38: #{value_forward.1} parent=1 // pred_check
      _
    $region39: #{value_forward.1} parent=1 // pred_check_branch
      %70 = sbr.rel (0) target = $region41
    $region40: #{value_forward.1} parent=1 // pred_region
      %71 = dma.done [#allocation8], 128
    $region41: #{value_forward.1} parent=1 // pred_fallthru
      _
    %v73 = vld [vmem:[#allocation7] sm:$0xff]
    %v74 = vld [vmem:[#allocation2] sm:$0xff]
    %v75 = vpack.c.bf16 %v74, %v74
    %v76 = vld [vmem:[%s2] sm:$0xf]
    %v77 = vld [vmem:[%s2 + $0x4] sm:$0xf]
    %v78 = vld [vmem:[%s2 + $0x8] sm:$0xf]
    %v79 = vld [vmem:[%s2 + $0xc] sm:$0xf]
    %v84 = vunpack.c.l.b16 %v76
    %v85 = vunpack.c.l.b16 %v77
    %v86 = vunpack.c.l.b16 %v78
    %v87 = vunpack.c.l.b16 %v79
    %v88 = vpack.c.b16 %v85, %v84
    %v89 = vpack.c.b16 %v87, %v86
    %vm92 = vcmask 261120
    %v94 = vsel %vm92, %v75, 0
    %96 = vmatprep.subr.bf16.mxu0 0
    %97 = vmatpush1.bf16.msra.mxu0 %v88
    %98 = vmatprep.subr.bf16.mxu0 0
    %99 = vmatpush1.bf16.msra.mxu0 %v89
    %100 = vmatprep.subr.bf16.mxu0 0
    %101 = vmatpush1.bf16.msra.mxu0 0
    %102 = vmatprep.subr.bf16.mxu0 0
    %103 = vmatpush1.bf16.msra.mxu0 0
    %104 = vmatprep.subr.bf16.mxu0 0
    %105 = vmatpush1.bf16.msra.mxu0 0
    %106 = vmatprep.subr.bf16.mxu0 0
    %107 = vmatpush1.bf16.msra.mxu0 0
    %108 = vmatprep.subr.bf16.mxu0 0
    %109 = vmatpush1.bf16.msra.mxu0 0
    %110 = vmatprep.subr.bf16.mxu0 0
    %111 = vmatpush1.bf16.msra.mxu0 0
    %112 = vmatprep.subr.bf16.mxu0 0
    %113 = vmatpush1.bf16.msra.mxu0 0
    %114 = vmatprep.subr.bf16.mxu0 0
    %115 = vmatpush1.bf16.msra.mxu0 0
    %116 = vmatprep.subr.bf16.mxu0 0
    %117 = vmatpush1.bf16.msra.mxu0 0
    %118 = vmatprep.subr.bf16.mxu0 0
    %119 = vmatpush1.bf16.msra.mxu0 0
    %120 = vmatprep.subr.bf16.mxu0 0
    %121 = vmatpush1.bf16.msra.mxu0 0
    %122 = vmatprep.subr.bf16.mxu0 0
    %123 = vmatpush1.bf16.msra.mxu0 0
    %124 = vmatprep.subr.bf16.mxu0 0
    %125 = vmatpush1.bf16.msra.mxu0 0
    %126 = vmatprep.subr.bf16.mxu0 0
    %127 = vmatpush1.bf16.msra.mxu0 0
    %128 = vmatprep.mubr.bf16.mxu0 0
    %129 = vmatmul.mubr.bf16.gmra.mrb[0].mxu0 %v94
    %v130 = vpop.f32.mrb[0].mxu0
    %v131 = vadd.f32 0.0, %v130
    %v132 = vpop.f32.mrb[0].mxu0
    %v133 = vpop.f32.mrb[0].mxu0
    %v134 = vpop.f32.mrb[0].mxu0
    %135 = vdwg.mxu0
    %v136 = vrot.slane %v131, 4
    %v137 = vadd.f32 %v131, %v136
    %v138 = vrot.slane %v137, 2
    %v139 = vadd.f32 %v137, %v138
    %v140 = vrot.slane %v139, 1
    %v141 = vadd.f32 %v139, %v140
    %v142 = vrcp.pop 8.0
    %v143 = vmul.f32 %v141, %v142
    %v144 = vmul.f32 %v131, %v131
    %v145 = vrot.slane %v144, 4
    %v146 = vadd.f32 %v144, %v145
    %v147 = vrot.slane %v146, 2
    %v148 = vadd.f32 %v146, %v147
    %v149 = vrot.slane %v148, 1
    %v150 = vadd.f32 %v148, %v149
    %v151 = vmul.f32 %v150, %v142
    %v152 = vmul.f32 %v143, %v143
    %v153 = vsub.f32 %v151, %v152
    %v154 = vmax.f32 %v153, 0.0
    %v155 = vadd.f32 %v154, 1e-05
    %v156 = vrsqrt.pop %v155
    %v157 = vmul.f32 %v73, %v156
    %v158 = vlaneseq
    %v159 = vshrl.u32 %v158, 7
    %v160 = vsub.s32 0, %v159
    %v161 = vrot.slane %v157, %v160
    %v162 = vmul.f32 %v131, %v161
    %v163 = vmul.f32 %v143, %v157
    %v165 = vrot.slane %v163, 7
    %v167 = vsub.f32 %v73, %v165
    %v168 = vlaneseq
    %v169 = vshrl.u32 %v168, 7
    %v170 = vsub.s32 1, %v169
    %v171 = vrot.slane %v167, %v170
    %v172 = vadd.f32 %v162, %v171
    %v173 = vmax.f32 %v172, 0.0
    %v174 = vld [vmem:[#allocation4] sm:$0xff]
    %v175 = vpack.c.bf16 %v174, %v174
    %v176 = vld [vmem:[%s3] sm:$0xf]
    %v177 = vlaneseq
    %v178 = vshrl.u32 %v177, 7
    %v179 = vsub.s32 4, %v178
    %v180 = vrot.slane %v73, %v179
    %vm181 = vcmask 64512
    %v183 = vsel %vm181, %v175, 0
    %vm185 = vcmask 1043456
    %v187 = vsel %vm185, %v176, 0
    %189 = vmatprep.subr.bf16.mxu0 0
    %190 = vmatpush1.bf16.msra.mxu0 %v187
    %191 = vmatprep.subr.bf16.mxu0 0
    %192 = vmatpush1.bf16.msra.mxu0 0
    %193 = vmatprep.subr.bf16.mxu0 0
    %194 = vmatpush1.bf16.msra.mxu0 0
    %195 = vmatprep.subr.bf16.mxu0 0
    %196 = vmatpush1.bf16.msra.mxu0 0
    %197 = vmatprep.subr.bf16.mxu0 0
    %198 = vmatpush1.bf16.msra.mxu0 0
    %199 = vmatprep.subr.bf16.mxu0 0
    %200 = vmatpush1.bf16.msra.mxu0 0
    %201 = vmatprep.subr.bf16.mxu0 0
    %202 = vmatpush1.bf16.msra.mxu0 0
    %203 = vmatprep.subr.bf16.mxu0 0
    %204 = vmatpush1.bf16.msra.mxu0 0
    %205 = vmatprep.subr.bf16.mxu0 0
    %206 = vmatpush1.bf16.msra.mxu0 0
    %207 = vmatprep.subr.bf16.mxu0 0
    %208 = vmatpush1.bf16.msra.mxu0 0
    %209 = vmatprep.subr.bf16.mxu0 0
    %210 = vmatpush1.bf16.msra.mxu0 0
    %211 = vmatprep.subr.bf16.mxu0 0
    %212 = vmatpush1.bf16.msra.mxu0 0
    %213 = vmatprep.subr.bf16.mxu0 0
    %214 = vmatpush1.bf16.msra.mxu0 0
    %215 = vmatprep.subr.bf16.mxu0 0
    %216 = vmatpush1.bf16.msra.mxu0 0
    %217 = vmatprep.subr.bf16.mxu0 0
    %218 = vmatpush1.bf16.msra.mxu0 0
    %219 = vmatprep.subr.bf16.mxu0 0
    %220 = vmatpush1.bf16.msra.mxu0 0
    %221 = vmatprep.mubr.bf16.mxu0 0
    %222 = vmatmul.mubr.bf16.gmra.mrb[0].mxu0 %v183
    %v223 = vpop.f32.mrb[0].mxu0
    %v224 = vadd.f32 %v180, %v223
    %v225 = vpop.f32.mrb[0].mxu0
    %v226 = vpop.f32.mrb[0].mxu0
    %v227 = vpop.f32.mrb[0].mxu0
    %228 = vdwg.mxu0
    %v229 = vpack.c.bf16 %v173, %v173
    %v230 = vld [vmem:[#allocation6] sm:$0xf]
    %v231 = vld [vmem:[#allocation6 + $0x4] sm:$0xf]
    %v232 = vld [vmem:[#allocation6 + $0x8] sm:$0xf]
    %v233 = vld [vmem:[#allocation6 + $0xc] sm:$0xf]
    %v234 = vld [vmem:[#allocation6 + $0x10] sm:$0xf]
    %v235 = vld [vmem:[#allocation6 + $0x14] sm:$0xf]
    %v236 = vld [vmem:[#allocation6 + $0x18] sm:$0xf]
    %v237 = vld [vmem:[#allocation6 + $0x1c] sm:$0xf]
    %v238 = vld [vmem:[#allocation6 + $0x20] sm:$0xf]
    %v239 = vld [vmem:[#allocation6 + $0x24] sm:$0xf]
    %v240 = vld [vmem:[#allocation6 + $0x28] sm:$0xf]
    %v241 = vld [vmem:[#allocation6 + $0x2c] sm:$0xf]
    %v242 = vld [vmem:[#allocation6 + $0x30] sm:$0xf]
    %v243 = vld [vmem:[#allocation6 + $0x34] sm:$0xf]
    %v244 = vld [vmem:[#allocation6 + $0x38] sm:$0xf]
    %v245 = vld [vmem:[#allocation6 + $0x3c] sm:$0xf]
    %v262 = vunpack.c.l.b16 %v230
    %v263 = vunpack.c.l.b16 %v231
    %v264 = vunpack.c.l.b16 %v232
    %v265 = vunpack.c.l.b16 %v233
    %v266 = vunpack.c.l.b16 %v234
    %v267 = vunpack.c.l.b16 %v235
    %v268 = vunpack.c.l.b16 %v236
    %v269 = vunpack.c.l.b16 %v237
    %v270 = vunpack.c.l.b16 %v238
    %v271 = vunpack.c.l.b16 %v239
    %v272 = vunpack.c.l.b16 %v240
    %v273 = vunpack.c.l.b16 %v241
    %v274 = vunpack.c.l.b16 %v242
    %v275 = vunpack.c.l.b16 %v243
    %v276 = vunpack.c.l.b16 %v244
    %v277 = vunpack.c.l.b16 %v245
    %v278 = vpack.c.b16 %v263, %v262
    %v279 = vpack.c.b16 %v265, %v264
    %v280 = vpack.c.b16 %v267, %v266
    %v281 = vpack.c.b16 %v269, %v268
    %v282 = vpack.c.b16 %v271, %v270
    %v283 = vpack.c.b16 %v273, %v272
    %v284 = vpack.c.b16 %v275, %v274
    %v285 = vpack.c.b16 %v277, %v276
    %294 = vmatprep.subr.bf16.mxu0 0
    %295 = vmatpush1.bf16.msra.mxu0 %v278
    %296 = vmatprep.subr.bf16.mxu0 0
    %297 = vmatpush1.bf16.msra.mxu0 %v279
    %298 = vmatprep.subr.bf16.mxu0 0
    %299 = vmatpush1.bf16.msra.mxu0 %v280
    %300 = vmatprep.subr.bf16.mxu0 0
    %301 = vmatpush1.bf16.msra.mxu0 %v281
    %302 = vmatprep.subr.bf16.mxu0 0
    %303 = vmatpush1.bf16.msra.mxu0 %v282
    %304 = vmatprep.subr.bf16.mxu0 0
    %305 = vmatpush1.bf16.msra.mxu0 %v283
    %306 = vmatprep.subr.bf16.mxu0 0
    %307 = vmatpush1.bf16.msra.mxu0 %v284
    %308 = vmatprep.subr.bf16.mxu0 0
    %309 = vmatpush1.bf16.msra.mxu0 %v285
    %310 = vmatprep.subr.bf16.mxu0 0
    %311 = vmatpush1.bf16.msra.mxu0 0
    %312 = vmatprep.subr.bf16.mxu0 0
    %313 = vmatpush1.bf16.msra.mxu0 0
    %314 = vmatprep.subr.bf16.mxu0 0
    %315 = vmatpush1.bf16.msra.mxu0 0
    %316 = vmatprep.subr.bf16.mxu0 0
    %317 = vmatpush1.bf16.msra.mxu0 0
    %318 = vmatprep.subr.bf16.mxu0 0
    %319 = vmatpush1.bf16.msra.mxu0 0
    %320 = vmatprep.subr.bf16.mxu0 0
    %321 = vmatpush1.bf16.msra.mxu0 0
    %322 = vmatprep.subr.bf16.mxu0 0
    %323 = vmatpush1.bf16.msra.mxu0 0
    %324 = vmatprep.subr.bf16.mxu0 0
    %325 = vmatpush1.bf16.msra.mxu0 0
    %326 = vmatprep.mubr.bf16.mxu0 0
    %327 = vmatmul.mubr.bf16.gmra.mrb[0].mxu0 %v229
    %v328 = vpop.f32.mrb[0].mxu0
    %v329 = vadd.f32 0.0, %v328
    %v330 = vpop.f32.mrb[0].mxu0
    %v331 = vpop.f32.mrb[0].mxu0
    %v332 = vpop.f32.mrb[0].mxu0
    %333 = vdwg.mxu0
    %v334 = vrot.slane %v329, 4
    %v335 = vadd.f32 %v329, %v334
    %v336 = vrot.slane %v335, 2
    %v337 = vadd.f32 %v335, %v336
    %v338 = vrot.slane %v337, 1
    %v339 = vadd.f32 %v337, %v338
    %v340 = vmul.f32 %v339, %v142
    %v341 = vmul.f32 %v329, %v329
    %v342 = vrot.slane %v341, 4
    %v343 = vadd.f32 %v341, %v342
    %v344 = vrot.slane %v343, 2
    %v345 = vadd.f32 %v343, %v344
    %v346 = vrot.slane %v345, 1
    %v347 = vadd.f32 %v345, %v346
    %v348 = vmul.f32 %v347, %v142
    %v349 = vmul.f32 %v340, %v340
    %v350 = vsub.f32 %v348, %v349
    %v351 = vmax.f32 %v350, 0.0
    %v352 = vadd.f32 %v351, 1e-05
    %v353 = vrsqrt.pop %v352
    %v354 = vmul.f32 %v73, %v353
    %v355 = vlaneseq
    %v356 = vshrl.u32 %v355, 7
    %v357 = vsub.s32 2, %v356
    %v358 = vrot.slane %v354, %v357
    %v359 = vmul.f32 %v329, %v358
    %v360 = vmul.f32 %v340, %v354
    %v362 = vrot.slane %v360, 7
    %v364 = vsub.f32 %v73, %v362
    %v365 = vlaneseq
    %v366 = vshrl.u32 %v365, 7
    %v367 = vsub.s32 3, %v366
    %v368 = vrot.slane %v364, %v367
    %v369 = vadd.f32 %v359, %v368
    %v370 = vmax.f32 %v369, 0.0
    %v371 = vadd.f32 %v370, %v224
    %v372 = vmax.f32 %v371, 0.0
    %v373 = vlaneseq
    %v374 = vshrl.u32 %v373, 7
    %v375 = vsub.s32 5, %v374
    %v376 = vrot.slane %v73, %v375
    %v377 = vmul.f32 %v372, %v376
    %378 = vadd.xlane.f32.xlu0 %v377
    %v379 = vpop.xlane.xlu0 %378
    %v380 = vlaneseq
    %v381 = vshrl.u32 %v380, 7
    %v382 = vsub.s32 6, %v381
    %v383 = vrot.slane %v73, %v382
    %v384 = vadd.f32 %v379, %v383
    %vm385 = vcmask 7168
    %386 = vst.msk [vmem:[%s6] sm:$0xff] %vm385, %v384
    // Predicated region
    $region42: #{value_forward.1} parent=1 // pred_check
      _
    $region43: #{value_forward.1} parent=1 // pred_check_branch
      %388 = sbr.rel (0) target = $region45
    $region44: #{value_forward.1} parent=1 // pred_region
      _
    $region45: #{value_forward.1} parent=1 // pred_fallthru
      _
    // Predicated region
    $region46: #{value_forward.1} parent=1 // pred_check
      _
    $region47: #{value_forward.1} parent=1 // pred_check_branch
      %390 = sbr.rel (0) target = $region49
    $region48: #{value_forward.1} parent=1 // pred_region
      _
    $region49: #{value_forward.1} parent=1 // pred_fallthru
      _
    %391 = vsyncpa [#allocation3], 1
    %392 = vsyncpa [#allocation5], 1
    %393 = vsyncpa [#allocation8], 1

</llo_original>
